<compile_context>
chip_gen: v7x
topology: tpu7x:2x2x1
jax: 0.10.0
libtpu: 0.0.40
codegen_flags: <defaults>
</compile_context>

<pallas_src>
import jax
import jax.numpy as jnp
from jax import lax
from jax.experimental import pallas as pl
from jax.experimental.pallas import tpu as pltpu

HIDDEN = 30   # fc1 output / fc3 input width
LANE = 128    # TPU vreg lane width


def class_model_kernel(x_ref, w1_ref, b1_ref, w3_ref, b3_ref, o_ref):
    # x_ref: (tile_rows, 128) f32 VMEM tile, batch on sublanes+lanes.
    # w1/b1/w3: (30,) f32 in SMEM, b3: (1,) f32 in SMEM.
    x = x_ref[...]

    def body(j, acc):
        # scalar reads from SMEM; scalar * vreg lowers to a VPU splat-mul.
        h = jnp.maximum(x * w1_ref[j] + b1_ref[j], 0.0)
        return acc + h * w3_ref[j]

    y0 = jnp.zeros_like(x) + b3_ref[0]
    y = lax.fori_loop(0, HIDDEN, body, y0, unroll=True)

    # sigmoid(y) = 1 / (1 + exp(-y)); exp and approx reciprocal on the EUP.
    o_ref[...] = pl.reciprocal(1.0 + jnp.exp(-y), approx=True).astype(o_ref.dtype)


def class_model_forward(x, w1, b1, w3, b3, *, tile_rows=512):
    """x: (B, 1) float32 -> (B, 1) float32."""
    B = x.shape[0]

    # Lane-dense layout: flatten the batch onto (rows, 128).
    rows = pl.cdiv(B, LANE)
    tile_rows = min(tile_rows, ((rows + 7) // 8) * 8)  # multiple of 8 sublanes
    n_tiles = pl.cdiv(rows, tile_rows)
    rows_padded = n_tiles * tile_rows
    padded_elems = rows_padded * LANE

    x_flat = x.reshape(-1).astype(jnp.float32)
    x_flat = jnp.pad(x_flat, (0, padded_elems - B))
    x2d = x_flat.reshape(rows_padded, LANE)

    out2d = pl.pallas_call(
        class_model_kernel,
        out_shape=jax.ShapeDtypeStruct((rows_padded, LANE), jnp.float32),
        grid=(n_tiles,),
        in_specs=[
            pl.BlockSpec((tile_rows, LANE), lambda i: (i, 0)),
            pl.BlockSpec(memory_space=pltpu.MemorySpace.SMEM),  # w1 (30,)
            pl.BlockSpec(memory_space=pltpu.MemorySpace.SMEM),  # b1 (30,)
            pl.BlockSpec(memory_space=pltpu.MemorySpace.SMEM),  # w3 (30,)
            pl.BlockSpec(memory_space=pltpu.MemorySpace.SMEM),  # b3 (1,)
        ],
        out_specs=pl.BlockSpec((tile_rows, LANE), lambda i: (i, 0)),
        compiler_params=pltpu.CompilerParams(
            dimension_semantics=("parallel",)),
    )(
        x2d,
        w1.reshape(-1).astype(jnp.float32),
        b1.reshape(-1).astype(jnp.float32),
        w3.reshape(-1).astype(jnp.float32),
        b3.reshape(-1).astype(jnp.float32),
    )

    return out2d.reshape(-1)[:B].reshape(B, 1)


def init_params(key):
    """Deterministic init mirroring nn.Linear's uniform(-1/sqrt(fan_in), ...)."""
    k1, k2, k3, k4 = jax.random.split(key, 4)
    # fc1: Linear(1, 30) -> weight (1, 30) in (in, out) layout, bias (30,)
    bound1 = 1.0 / jnp.sqrt(1.0)
    w1 = jax.random.uniform(k1, (1, 30), jnp.float32, -bound1, bound1)
    b1 = jax.random.uniform(k2, (30,), jnp.float32, -bound1, bound1)
    # fc3: Linear(30, 1) -> weight (30, 1), bias (1,)
    bound3 = 1.0 / jnp.sqrt(30.0)
    w3 = jax.random.uniform(k3, (30, 1), jnp.float32, -bound3, bound3)
    b3 = jax.random.uniform(k4, (1,), jnp.float32, -bound3, bound3)
    # fc2 (Linear(30, 30)) exists in __init__ but is unused in forward; omitted.
    return w1, b1, w3, b3


def reference_forward(x, w1, b1, w3, b3):
    h = jnp.maximum(x @ w1 + b1, 0.0)
    return jax.nn.sigmoid(h @ w3 + b3)


if __name__ == "__main__":
    key = jax.random.PRNGKey(0)
    kx, kp = jax.random.split(key)
    w1, b1, w3, b3 = init_params(kp)

    # Small, non-multiple-of-128 batch (exercises padding) on a single tile.
    B = 300
    x = jax.random.normal(kx, (B, 1), jnp.float32)
    out = jax.block_until_ready(class_model_forward(x, w1, b1, w3, b3))
    ref = reference_forward(x, w1, b1, w3, b3)
    assert out.shape == (B, 1)
    # atol accounts for the approx EUP reciprocal in sigmoid (~1e-4 abs).
    assert jnp.allclose(out, ref, atol=1e-3, rtol=1e-3)

    # Multi-tile grid check (3 grid steps of 8x128 rows).
    B2 = 3000
    x2 = jax.random.normal(kx, (B2, 1), jnp.float32)
    out2 = jax.block_until_ready(
        class_model_forward(x2, w1, b1, w3, b3, tile_rows=8))
    ref2 = reference_forward(x2, w1, b1, w3, b3)
    assert out2.shape == (B2, 1)
    assert jnp.allclose(out2, ref2, atol=1e-3, rtol=1e-3)

    print("KERNEL_OK")
</pallas_src>

<mosaic_0001>
module attributes {stable_mosaic.version = 11 : i64} {
  func.func @class_model_kernel(%arg0: i32, %arg1: memref<8x128xf32, #tpu.memory_space<vmem>>, %arg2: memref<30xf32, #tpu.memory_space<smem>>, %arg3: memref<30xf32, #tpu.memory_space<smem>>, %arg4: memref<30xf32, #tpu.memory_space<smem>>, %arg5: memref<1xf32, #tpu.memory_space<smem>>, %arg6: memref<8x128xf32, #tpu.memory_space<vmem>>) attributes {dimension_semantics = [#tpu.dimension_semantics<parallel>], iteration_bounds = array<i64: 1>, scalar_prefetch = 0 : i64, scratch_operands = 0 : i64, tpu.core_type = #tpu.core_type<tc>, window_params = [{transform_indices = @transform_0, window_bounds = array<i64: 8, 128>}, {transform_indices = @transform_1, window_bounds = array<i64: 30>}, {transform_indices = @transform_2, window_bounds = array<i64: 30>}, {transform_indices = @transform_3, window_bounds = array<i64: 30>}, {transform_indices = @transform_4, window_bounds = array<i64: 1>}, {transform_indices = @transform_5, window_bounds = array<i64: 8, 128>}]} {
    %c0 = arith.constant 0 : index
    %c0_0 = arith.constant 0 : index
    %0 = vector.load %arg1[%c0, %c0_0] : memref<8x128xf32, #tpu.memory_space<vmem>>, vector<8x128xf32>
    %cst = arith.constant 0.000000e+00 : f32
    %1 = vector.broadcast %cst : f32 to vector<8x128xf32>
    %c0_1 = arith.constant 0 : index
    %2 = memref.load %arg5[%c0_1] : memref<1xf32, #tpu.memory_space<smem>>
    %3 = vector.broadcast %2 : f32 to vector<8x128xf32>
    %4 = arith.addf %1, %3 : vector<8x128xf32>
    %c0_i32 = arith.constant 0 : i32
    %5 = arith.index_cast %c0_i32 : i32 to index
    %6 = memref.load %arg2[%5] : memref<30xf32, #tpu.memory_space<smem>>
    %7 = vector.broadcast %6 : f32 to vector<8x128xf32>
    %8 = arith.mulf %0, %7 : vector<8x128xf32>
    %9 = arith.index_cast %c0_i32 : i32 to index
    %10 = memref.load %arg3[%9] : memref<30xf32, #tpu.memory_space<smem>>
    %11 = vector.broadcast %10 : f32 to vector<8x128xf32>
    %12 = arith.addf %8, %11 : vector<8x128xf32>
    %cst_2 = arith.constant 0.000000e+00 : f32
    %13 = vector.broadcast %cst_2 : f32 to vector<8x128xf32>
    %14 = arith.maximumf %12, %13 : vector<8x128xf32>
    %15 = arith.index_cast %c0_i32 : i32 to index
    %16 = memref.load %arg4[%15] : memref<30xf32, #tpu.memory_space<smem>>
    %17 = vector.broadcast %16 : f32 to vector<8x128xf32>
    %18 = arith.mulf %14, %17 : vector<8x128xf32>
    %19 = arith.addf %4, %18 : vector<8x128xf32>
    %c1_i32 = arith.constant 1 : i32
    %20 = arith.index_cast %c1_i32 : i32 to index
    %21 = memref.load %arg2[%20] : memref<30xf32, #tpu.memory_space<smem>>
    %22 = vector.broadcast %21 : f32 to vector<8x128xf32>
    %23 = arith.mulf %0, %22 : vector<8x128xf32>
    %24 = arith.index_cast %c1_i32 : i32 to index
    %25 = memref.load %arg3[%24] : memref<30xf32, #tpu.memory_space<smem>>
    %26 = vector.broadcast %25 : f32 to vector<8x128xf32>
    %27 = arith.addf %23, %26 : vector<8x128xf32>
    %cst_3 = arith.constant 0.000000e+00 : f32
    %28 = vector.broadcast %cst_3 : f32 to vector<8x128xf32>
    %29 = arith.maximumf %27, %28 : vector<8x128xf32>
    %30 = arith.index_cast %c1_i32 : i32 to index
    %31 = memref.load %arg4[%30] : memref<30xf32, #tpu.memory_space<smem>>
    %32 = vector.broadcast %31 : f32 to vector<8x128xf32>
    %33 = arith.mulf %29, %32 : vector<8x128xf32>
    %34 = arith.addf %19, %33 : vector<8x128xf32>
    %c2_i32 = arith.constant 2 : i32
    %35 = arith.index_cast %c2_i32 : i32 to index
    %36 = memref.load %arg2[%35] : memref<30xf32, #tpu.memory_space<smem>>
    %37 = vector.broadcast %36 : f32 to vector<8x128xf32>
    %38 = arith.mulf %0, %37 : vector<8x128xf32>
    %39 = arith.index_cast %c2_i32 : i32 to index
    %40 = memref.load %arg3[%39] : memref<30xf32, #tpu.memory_space<smem>>
    %41 = vector.broadcast %40 : f32 to vector<8x128xf32>
    %42 = arith.addf %38, %41 : vector<8x128xf32>
    %cst_4 = arith.constant 0.000000e+00 : f32
    %43 = vector.broadcast %cst_4 : f32 to vector<8x128xf32>
    %44 = arith.maximumf %42, %43 : vector<8x128xf32>
    %45 = arith.index_cast %c2_i32 : i32 to index
    %46 = memref.load %arg4[%45] : memref<30xf32, #tpu.memory_space<smem>>
    %47 = vector.broadcast %46 : f32 to vector<8x128xf32>
    %48 = arith.mulf %44, %47 : vector<8x128xf32>
    %49 = arith.addf %34, %48 : vector<8x128xf32>
    %c3_i32 = arith.constant 3 : i32
    %50 = arith.index_cast %c3_i32 : i32 to index
    %51 = memref.load %arg2[%50] : memref<30xf32, #tpu.memory_space<smem>>
    %52 = vector.broadcast %51 : f32 to vector<8x128xf32>
    %53 = arith.mulf %0, %52 : vector<8x128xf32>
    %54 = arith.index_cast %c3_i32 : i32 to index
    %55 = memref.load %arg3[%54] : memref<30xf32, #tpu.memory_space<smem>>
    %56 = vector.broadcast %55 : f32 to vector<8x128xf32>
    %57 = arith.addf %53, %56 : vector<8x128xf32>
    %cst_5 = arith.constant 0.000000e+00 : f32
    %58 = vector.broadcast %cst_5 : f32 to vector<8x128xf32>
    %59 = arith.maximumf %57, %58 : vector<8x128xf32>
    %60 = arith.index_cast %c3_i32 : i32 to index
    %61 = memref.load %arg4[%60] : memref<30xf32, #tpu.memory_space<smem>>
    %62 = vector.broadcast %61 : f32 to vector<8x128xf32>
    %63 = arith.mulf %59, %62 : vector<8x128xf32>
    %64 = arith.addf %49, %63 : vector<8x128xf32>
    %c4_i32 = arith.constant 4 : i32
    %65 = arith.index_cast %c4_i32 : i32 to index
    %66 = memref.load %arg2[%65] : memref<30xf32, #tpu.memory_space<smem>>
    %67 = vector.broadcast %66 : f32 to vector<8x128xf32>
    %68 = arith.mulf %0, %67 : vector<8x128xf32>
    %69 = arith.index_cast %c4_i32 : i32 to index
    %70 = memref.load %arg3[%69] : memref<30xf32, #tpu.memory_space<smem>>
    %71 = vector.broadcast %70 : f32 to vector<8x128xf32>
    %72 = arith.addf %68, %71 : vector<8x128xf32>
    %cst_6 = arith.constant 0.000000e+00 : f32
    %73 = vector.broadcast %cst_6 : f32 to vector<8x128xf32>
    %74 = arith.maximumf %72, %73 : vector<8x128xf32>
    %75 = arith.index_cast %c4_i32 : i32 to index
    %76 = memref.load %arg4[%75] : memref<30xf32, #tpu.memory_space<smem>>
    %77 = vector.broadcast %76 : f32 to vector<8x128xf32>
    %78 = arith.mulf %74, %77 : vector<8x128xf32>
    %79 = arith.addf %64, %78 : vector<8x128xf32>
    %c5_i32 = arith.constant 5 : i32
    %80 = arith.index_cast %c5_i32 : i32 to index
    %81 = memref.load %arg2[%80] : memref<30xf32, #tpu.memory_space<smem>>
    %82 = vector.broadcast %81 : f32 to vector<8x128xf32>
    %83 = arith.mulf %0, %82 : vector<8x128xf32>
    %84 = arith.index_cast %c5_i32 : i32 to index
    %85 = memref.load %arg3[%84] : memref<30xf32, #tpu.memory_space<smem>>
    %86 = vector.broadcast %85 : f32 to vector<8x128xf32>
    %87 = arith.addf %83, %86 : vector<8x128xf32>
    %cst_7 = arith.constant 0.000000e+00 : f32
    %88 = vector.broadcast %cst_7 : f32 to vector<8x128xf32>
    %89 = arith.maximumf %87, %88 : vector<8x128xf32>
    %90 = arith.index_cast %c5_i32 : i32 to index
    %91 = memref.load %arg4[%90] : memref<30xf32, #tpu.memory_space<smem>>
    %92 = vector.broadcast %91 : f32 to vector<8x128xf32>
    %93 = arith.mulf %89, %92 : vector<8x128xf32>
    %94 = arith.addf %79, %93 : vector<8x128xf32>
    %c6_i32 = arith.constant 6 : i32
    %95 = arith.index_cast %c6_i32 : i32 to index
    %96 = memref.load %arg2[%95] : memref<30xf32, #tpu.memory_space<smem>>
    %97 = vector.broadcast %96 : f32 to vector<8x128xf32>
    %98 = arith.mulf %0, %97 : vector<8x128xf32>
    %99 = arith.index_cast %c6_i32 : i32 to index
    %100 = memref.load %arg3[%99] : memref<30xf32, #tpu.memory_space<smem>>
    %101 = vector.broadcast %100 : f32 to vector<8x128xf32>
    %102 = arith.addf %98, %101 : vector<8x128xf32>
    %cst_8 = arith.constant 0.000000e+00 : f32
    %103 = vector.broadcast %cst_8 : f32 to vector<8x128xf32>
    %104 = arith.maximumf %102, %103 : vector<8x128xf32>
    %105 = arith.index_cast %c6_i32 : i32 to index
    %106 = memref.load %arg4[%105] : memref<30xf32, #tpu.memory_space<smem>>
    %107 = vector.broadcast %106 : f32 to vector<8x128xf32>
    %108 = arith.mulf %104, %107 : vector<8x128xf32>
    %109 = arith.addf %94, %108 : vector<8x128xf32>
    %c7_i32 = arith.constant 7 : i32
    %110 = arith.index_cast %c7_i32 : i32 to index
    %111 = memref.load %arg2[%110] : memref<30xf32, #tpu.memory_space<smem>>
    %112 = vector.broadcast %111 : f32 to vector<8x128xf32>
    %113 = arith.mulf %0, %112 : vector<8x128xf32>
    %114 = arith.index_cast %c7_i32 : i32 to index
    %115 = memref.load %arg3[%114] : memref<30xf32, #tpu.memory_space<smem>>
    %116 = vector.broadcast %115 : f32 to vector<8x128xf32>
    %117 = arith.addf %113, %116 : vector<8x128xf32>
    %cst_9 = arith.constant 0.000000e+00 : f32
    %118 = vector.broadcast %cst_9 : f32 to vector<8x128xf32>
    %119 = arith.maximumf %117, %118 : vector<8x128xf32>
    %120 = arith.index_cast %c7_i32 : i32 to index
    %121 = memref.load %arg4[%120] : memref<30xf32, #tpu.memory_space<smem>>
    %122 = vector.broadcast %121 : f32 to vector<8x128xf32>
    %123 = arith.mulf %119, %122 : vector<8x128xf32>
    %124 = arith.addf %109, %123 : vector<8x128xf32>
    %c8_i32 = arith.constant 8 : i32
    %125 = arith.index_cast %c8_i32 : i32 to index
    %126 = memref.load %arg2[%125] : memref<30xf32, #tpu.memory_space<smem>>
    %127 = vector.broadcast %126 : f32 to vector<8x128xf32>
    %128 = arith.mulf %0, %127 : vector<8x128xf32>
    %129 = arith.index_cast %c8_i32 : i32 to index
    %130 = memref.load %arg3[%129] : memref<30xf32, #tpu.memory_space<smem>>
    %131 = vector.broadcast %130 : f32 to vector<8x128xf32>
    %132 = arith.addf %128, %131 : vector<8x128xf32>
    %cst_10 = arith.constant 0.000000e+00 : f32
    %133 = vector.broadcast %cst_10 : f32 to vector<8x128xf32>
    %134 = arith.maximumf %132, %133 : vector<8x128xf32>
    %135 = arith.index_cast %c8_i32 : i32 to index
    %136 = memref.load %arg4[%135] : memref<30xf32, #tpu.memory_space<smem>>
    %137 = vector.broadcast %136 : f32 to vector<8x128xf32>
    %138 = arith.mulf %134, %137 : vector<8x128xf32>
    %139 = arith.addf %124, %138 : vector<8x128xf32>
    %c9_i32 = arith.constant 9 : i32
    %140 = arith.index_cast %c9_i32 : i32 to index
    %141 = memref.load %arg2[%140] : memref<30xf32, #tpu.memory_space<smem>>
    %142 = vector.broadcast %141 : f32 to vector<8x128xf32>
    %143 = arith.mulf %0, %142 : vector<8x128xf32>
    %144 = arith.index_cast %c9_i32 : i32 to index
    %145 = memref.load %arg3[%144] : memref<30xf32, #tpu.memory_space<smem>>
    %146 = vector.broadcast %145 : f32 to vector<8x128xf32>
    %147 = arith.addf %143, %146 : vector<8x128xf32>
    %cst_11 = arith.constant 0.000000e+00 : f32
    %148 = vector.broadcast %cst_11 : f32 to vector<8x128xf32>
    %149 = arith.maximumf %147, %148 : vector<8x128xf32>
    %150 = arith.index_cast %c9_i32 : i32 to index
    %151 = memref.load %arg4[%150] : memref<30xf32, #tpu.memory_space<smem>>
    %152 = vector.broadcast %151 : f32 to vector<8x128xf32>
    %153 = arith.mulf %149, %152 : vector<8x128xf32>
    %154 = arith.addf %139, %153 : vector<8x128xf32>
    %c10_i32 = arith.constant 10 : i32
    %155 = arith.index_cast %c10_i32 : i32 to index
    %156 = memref.load %arg2[%155] : memref<30xf32, #tpu.memory_space<smem>>
    %157 = vector.broadcast %156 : f32 to vector<8x128xf32>
    %158 = arith.mulf %0, %157 : vector<8x128xf32>
    %159 = arith.index_cast %c10_i32 : i32 to index
    %160 = memref.load %arg3[%159] : memref<30xf32, #tpu.memory_space<smem>>
    %161 = vector.broadcast %160 : f32 to vector<8x128xf32>
    %162 = arith.addf %158, %161 : vector<8x128xf32>
    %cst_12 = arith.constant 0.000000e+00 : f32
    %163 = vector.broadcast %cst_12 : f32 to vector<8x128xf32>
    %164 = arith.maximumf %162, %163 : vector<8x128xf32>
    %165 = arith.index_cast %c10_i32 : i32 to index
    %166 = memref.load %arg4[%165] : memref<30xf32, #tpu.memory_space<smem>>
    %167 = vector.broadcast %166 : f32 to vector<8x128xf32>
    %168 = arith.mulf %164, %167 : vector<8x128xf32>
    %169 = arith.addf %154, %168 : vector<8x128xf32>
    %c11_i32 = arith.constant 11 : i32
    %170 = arith.index_cast %c11_i32 : i32 to index
    %171 = memref.load %arg2[%170] : memref<30xf32, #tpu.memory_space<smem>>
    %172 = vector.broadcast %171 : f32 to vector<8x128xf32>
    %173 = arith.mulf %0, %172 : vector<8x128xf32>
    %174 = arith.index_cast %c11_i32 : i32 to index
    %175 = memref.load %arg3[%174] : memref<30xf32, #tpu.memory_space<smem>>
    %176 = vector.broadcast %175 : f32 to vector<8x128xf32>
    %177 = arith.addf %173, %176 : vector<8x128xf32>
    %cst_13 = arith.constant 0.000000e+00 : f32
    %178 = vector.broadcast %cst_13 : f32 to vector<8x128xf32>
    %179 = arith.maximumf %177, %178 : vector<8x128xf32>
    %180 = arith.index_cast %c11_i32 : i32 to index
    %181 = memref.load %arg4[%180] : memref<30xf32, #tpu.memory_space<smem>>
    %182 = vector.broadcast %181 : f32 to vector<8x128xf32>
    %183 = arith.mulf %179, %182 : vector<8x128xf32>
    %184 = arith.addf %169, %183 : vector<8x128xf32>
    %c12_i32 = arith.constant 12 : i32
    %185 = arith.index_cast %c12_i32 : i32 to index
    %186 = memref.load %arg2[%185] : memref<30xf32, #tpu.memory_space<smem>>
    %187 = vector.broadcast %186 : f32 to vector<8x128xf32>
    %188 = arith.mulf %0, %187 : vector<8x128xf32>
    %189 = arith.index_cast %c12_i32 : i32 to index
    %190 = memref.load %arg3[%189] : memref<30xf32, #tpu.memory_space<smem>>
    %191 = vector.broadcast %190 : f32 to vector<8x128xf32>
    %192 = arith.addf %188, %191 : vector<8x128xf32>
    %cst_14 = arith.constant 0.000000e+00 : f32
    %193 = vector.broadcast %cst_14 : f32 to vector<8x128xf32>
    %194 = arith.maximumf %192, %193 : vector<8x128xf32>
    %195 = arith.index_cast %c12_i32 : i32 to index
    %196 = memref.load %arg4[%195] : memref<30xf32, #tpu.memory_space<smem>>
    %197 = vector.broadcast %196 : f32 to vector<8x128xf32>
    %198 = arith.mulf %194, %197 : vector<8x128xf32>
    %199 = arith.addf %184, %198 : vector<8x128xf32>
    %c13_i32 = arith.constant 13 : i32
    %200 = arith.index_cast %c13_i32 : i32 to index
    %201 = memref.load %arg2[%200] : memref<30xf32, #tpu.memory_space<smem>>
    %202 = vector.broadcast %201 : f32 to vector<8x128xf32>
    %203 = arith.mulf %0, %202 : vector<8x128xf32>
    %204 = arith.index_cast %c13_i32 : i32 to index
    %205 = memref.load %arg3[%204] : memref<30xf32, #tpu.memory_space<smem>>
    %206 = vector.broadcast %205 : f32 to vector<8x128xf32>
    %207 = arith.addf %203, %206 : vector<8x128xf32>
    %cst_15 = arith.constant 0.000000e+00 : f32
    %208 = vector.broadcast %cst_15 : f32 to vector<8x128xf32>
    %209 = arith.maximumf %207, %208 : vector<8x128xf32>
    %210 = arith.index_cast %c13_i32 : i32 to index
    %211 = memref.load %arg4[%210] : memref<30xf32, #tpu.memory_space<smem>>
    %212 = vector.broadcast %211 : f32 to vector<8x128xf32>
    %213 = arith.mulf %209, %212 : vector<8x128xf32>
    %214 = arith.addf %199, %213 : vector<8x128xf32>
    %c14_i32 = arith.constant 14 : i32
    %215 = arith.index_cast %c14_i32 : i32 to index
    %216 = memref.load %arg2[%215] : memref<30xf32, #tpu.memory_space<smem>>
    %217 = vector.broadcast %216 : f32 to vector<8x128xf32>
    %218 = arith.mulf %0, %217 : vector<8x128xf32>
    %219 = arith.index_cast %c14_i32 : i32 to index
    %220 = memref.load %arg3[%219] : memref<30xf32, #tpu.memory_space<smem>>
    %221 = vector.broadcast %220 : f32 to vector<8x128xf32>
    %222 = arith.addf %218, %221 : vector<8x128xf32>
    %cst_16 = arith.constant 0.000000e+00 : f32
    %223 = vector.broadcast %cst_16 : f32 to vector<8x128xf32>
    %224 = arith.maximumf %222, %223 : vector<8x128xf32>
    %225 = arith.index_cast %c14_i32 : i32 to index
    %226 = memref.load %arg4[%225] : memref<30xf32, #tpu.memory_space<smem>>
    %227 = vector.broadcast %226 : f32 to vector<8x128xf32>
    %228 = arith.mulf %224, %227 : vector<8x128xf32>
    %229 = arith.addf %214, %228 : vector<8x128xf32>
    %c15_i32 = arith.constant 15 : i32
    %230 = arith.index_cast %c15_i32 : i32 to index
    %231 = memref.load %arg2[%230] : memref<30xf32, #tpu.memory_space<smem>>
    %232 = vector.broadcast %231 : f32 to vector<8x128xf32>
    %233 = arith.mulf %0, %232 : vector<8x128xf32>
    %234 = arith.index_cast %c15_i32 : i32 to index
    %235 = memref.load %arg3[%234] : memref<30xf32, #tpu.memory_space<smem>>
    %236 = vector.broadcast %235 : f32 to vector<8x128xf32>
    %237 = arith.addf %233, %236 : vector<8x128xf32>
    %cst_17 = arith.constant 0.000000e+00 : f32
    %238 = vector.broadcast %cst_17 : f32 to vector<8x128xf32>
    %239 = arith.maximumf %237, %238 : vector<8x128xf32>
    %240 = arith.index_cast %c15_i32 : i32 to index
    %241 = memref.load %arg4[%240] : memref<30xf32, #tpu.memory_space<smem>>
    %242 = vector.broadcast %241 : f32 to vector<8x128xf32>
    %243 = arith.mulf %239, %242 : vector<8x128xf32>
    %244 = arith.addf %229, %243 : vector<8x128xf32>
    %c16_i32 = arith.constant 16 : i32
    %245 = arith.index_cast %c16_i32 : i32 to index
    %246 = memref.load %arg2[%245] : memref<30xf32, #tpu.memory_space<smem>>
    %247 = vector.broadcast %246 : f32 to vector<8x128xf32>
    %248 = arith.mulf %0, %247 : vector<8x128xf32>
    %249 = arith.index_cast %c16_i32 : i32 to index
    %250 = memref.load %arg3[%249] : memref<30xf32, #tpu.memory_space<smem>>
    %251 = vector.broadcast %250 : f32 to vector<8x128xf32>
    %252 = arith.addf %248, %251 : vector<8x128xf32>
    %cst_18 = arith.constant 0.000000e+00 : f32
    %253 = vector.broadcast %cst_18 : f32 to vector<8x128xf32>
    %254 = arith.maximumf %252, %253 : vector<8x128xf32>
    %255 = arith.index_cast %c16_i32 : i32 to index
    %256 = memref.load %arg4[%255] : memref<30xf32, #tpu.memory_space<smem>>
    %257 = vector.broadcast %256 : f32 to vector<8x128xf32>
    %258 = arith.mulf %254, %257 : vector<8x128xf32>
    %259 = arith.addf %244, %258 : vector<8x128xf32>
    %c17_i32 = arith.constant 17 : i32
    %260 = arith.index_cast %c17_i32 : i32 to index
    %261 = memref.load %arg2[%260] : memref<30xf32, #tpu.memory_space<smem>>
    %262 = vector.broadcast %261 : f32 to vector<8x128xf32>
    %263 = arith.mulf %0, %262 : vector<8x128xf32>
    %264 = arith.index_cast %c17_i32 : i32 to index
    %265 = memref.load %arg3[%264] : memref<30xf32, #tpu.memory_space<smem>>
    %266 = vector.broadcast %265 : f32 to vector<8x128xf32>
    %267 = arith.addf %263, %266 : vector<8x128xf32>
    %cst_19 = arith.constant 0.000000e+00 : f32
    %268 = vector.broadcast %cst_19 : f32 to vector<8x128xf32>
    %269 = arith.maximumf %267, %268 : vector<8x128xf32>
    %270 = arith.index_cast %c17_i32 : i32 to index
    %271 = memref.load %arg4[%270] : memref<30xf32, #tpu.memory_space<smem>>
    %272 = vector.broadcast %271 : f32 to vector<8x128xf32>
    %273 = arith.mulf %269, %272 : vector<8x128xf32>
    %274 = arith.addf %259, %273 : vector<8x128xf32>
    %c18_i32 = arith.constant 18 : i32
    %275 = arith.index_cast %c18_i32 : i32 to index
    %276 = memref.load %arg2[%275] : memref<30xf32, #tpu.memory_space<smem>>
    %277 = vector.broadcast %276 : f32 to vector<8x128xf32>
    %278 = arith.mulf %0, %277 : vector<8x128xf32>
    %279 = arith.index_cast %c18_i32 : i32 to index
    %280 = memref.load %arg3[%279] : memref<30xf32, #tpu.memory_space<smem>>
    %281 = vector.broadcast %280 : f32 to vector<8x128xf32>
    %282 = arith.addf %278, %281 : vector<8x128xf32>
    %cst_20 = arith.constant 0.000000e+00 : f32
    %283 = vector.broadcast %cst_20 : f32 to vector<8x128xf32>
    %284 = arith.maximumf %282, %283 : vector<8x128xf32>
    %285 = arith.index_cast %c18_i32 : i32 to index
    %286 = memref.load %arg4[%285] : memref<30xf32, #tpu.memory_space<smem>>
    %287 = vector.broadcast %286 : f32 to vector<8x128xf32>
    %288 = arith.mulf %284, %287 : vector<8x128xf32>
    %289 = arith.addf %274, %288 : vector<8x128xf32>
    %c19_i32 = arith.constant 19 : i32
    %290 = arith.index_cast %c19_i32 : i32 to index
    %291 = memref.load %arg2[%290] : memref<30xf32, #tpu.memory_space<smem>>
    %292 = vector.broadcast %291 : f32 to vector<8x128xf32>
    %293 = arith.mulf %0, %292 : vector<8x128xf32>
    %294 = arith.index_cast %c19_i32 : i32 to index
    %295 = memref.load %arg3[%294] : memref<30xf32, #tpu.memory_space<smem>>
    %296 = vector.broadcast %295 : f32 to vector<8x128xf32>
    %297 = arith.addf %293, %296 : vector<8x128xf32>
    %cst_21 = arith.constant 0.000000e+00 : f32
    %298 = vector.broadcast %cst_21 : f32 to vector<8x128xf32>
    %299 = arith.maximumf %297, %298 : vector<8x128xf32>
    %300 = arith.index_cast %c19_i32 : i32 to index
    %301 = memref.load %arg4[%300] : memref<30xf32, #tpu.memory_space<smem>>
    %302 = vector.broadcast %301 : f32 to vector<8x128xf32>
    %303 = arith.mulf %299, %302 : vector<8x128xf32>
    %304 = arith.addf %289, %303 : vector<8x128xf32>
    %c20_i32 = arith.constant 20 : i32
    %305 = arith.index_cast %c20_i32 : i32 to index
    %306 = memref.load %arg2[%305] : memref<30xf32, #tpu.memory_space<smem>>
    %307 = vector.broadcast %306 : f32 to vector<8x128xf32>
    %308 = arith.mulf %0, %307 : vector<8x128xf32>
    %309 = arith.index_cast %c20_i32 : i32 to index
    %310 = memref.load %arg3[%309] : memref<30xf32, #tpu.memory_space<smem>>
    %311 = vector.broadcast %310 : f32 to vector<8x128xf32>
    %312 = arith.addf %308, %311 : vector<8x128xf32>
    %cst_22 = arith.constant 0.000000e+00 : f32
    %313 = vector.broadcast %cst_22 : f32 to vector<8x128xf32>
    %314 = arith.maximumf %312, %313 : vector<8x128xf32>
    %315 = arith.index_cast %c20_i32 : i32 to index
    %316 = memref.load %arg4[%315] : memref<30xf32, #tpu.memory_space<smem>>
    %317 = vector.broadcast %316 : f32 to vector<8x128xf32>
    %318 = arith.mulf %314, %317 : vector<8x128xf32>
    %319 = arith.addf %304, %318 : vector<8x128xf32>
    %c21_i32 = arith.constant 21 : i32
    %320 = arith.index_cast %c21_i32 : i32 to index
    %321 = memref.load %arg2[%320] : memref<30xf32, #tpu.memory_space<smem>>
    %322 = vector.broadcast %321 : f32 to vector<8x128xf32>
    %323 = arith.mulf %0, %322 : vector<8x128xf32>
    %324 = arith.index_cast %c21_i32 : i32 to index
    %325 = memref.load %arg3[%324] : memref<30xf32, #tpu.memory_space<smem>>
    %326 = vector.broadcast %325 : f32 to vector<8x128xf32>
    %327 = arith.addf %323, %326 : vector<8x128xf32>
    %cst_23 = arith.constant 0.000000e+00 : f32
    %328 = vector.broadcast %cst_23 : f32 to vector<8x128xf32>
    %329 = arith.maximumf %327, %328 : vector<8x128xf32>
    %330 = arith.index_cast %c21_i32 : i32 to index
    %331 = memref.load %arg4[%330] : memref<30xf32, #tpu.memory_space<smem>>
    %332 = vector.broadcast %331 : f32 to vector<8x128xf32>
    %333 = arith.mulf %329, %332 : vector<8x128xf32>
    %334 = arith.addf %319, %333 : vector<8x128xf32>
    %c22_i32 = arith.constant 22 : i32
    %335 = arith.index_cast %c22_i32 : i32 to index
    %336 = memref.load %arg2[%335] : memref<30xf32, #tpu.memory_space<smem>>
    %337 = vector.broadcast %336 : f32 to vector<8x128xf32>
    %338 = arith.mulf %0, %337 : vector<8x128xf32>
    %339 = arith.index_cast %c22_i32 : i32 to index
    %340 = memref.load %arg3[%339] : memref<30xf32, #tpu.memory_space<smem>>
    %341 = vector.broadcast %340 : f32 to vector<8x128xf32>
    %342 = arith.addf %338, %341 : vector<8x128xf32>
    %cst_24 = arith.constant 0.000000e+00 : f32
    %343 = vector.broadcast %cst_24 : f32 to vector<8x128xf32>
    %344 = arith.maximumf %342, %343 : vector<8x128xf32>
    %345 = arith.index_cast %c22_i32 : i32 to index
    %346 = memref.load %arg4[%345] : memref<30xf32, #tpu.memory_space<smem>>
    %347 = vector.broadcast %346 : f32 to vector<8x128xf32>
    %348 = arith.mulf %344, %347 : vector<8x128xf32>
    %349 = arith.addf %334, %348 : vector<8x128xf32>
    %c23_i32 = arith.constant 23 : i32
    %350 = arith.index_cast %c23_i32 : i32 to index
    %351 = memref.load %arg2[%350] : memref<30xf32, #tpu.memory_space<smem>>
    %352 = vector.broadcast %351 : f32 to vector<8x128xf32>
    %353 = arith.mulf %0, %352 : vector<8x128xf32>
    %354 = arith.index_cast %c23_i32 : i32 to index
    %355 = memref.load %arg3[%354] : memref<30xf32, #tpu.memory_space<smem>>
    %356 = vector.broadcast %355 : f32 to vector<8x128xf32>
    %357 = arith.addf %353, %356 : vector<8x128xf32>
    %cst_25 = arith.constant 0.000000e+00 : f32
    %358 = vector.broadcast %cst_25 : f32 to vector<8x128xf32>
    %359 = arith.maximumf %357, %358 : vector<8x128xf32>
    %360 = arith.index_cast %c23_i32 : i32 to index
    %361 = memref.load %arg4[%360] : memref<30xf32, #tpu.memory_space<smem>>
    %362 = vector.broadcast %361 : f32 to vector<8x128xf32>
    %363 = arith.mulf %359, %362 : vector<8x128xf32>
    %364 = arith.addf %349, %363 : vector<8x128xf32>
    %c24_i32 = arith.constant 24 : i32
    %365 = arith.index_cast %c24_i32 : i32 to index
    %366 = memref.load %arg2[%365] : memref<30xf32, #tpu.memory_space<smem>>
    %367 = vector.broadcast %366 : f32 to vector<8x128xf32>
    %368 = arith.mulf %0, %367 : vector<8x128xf32>
    %369 = arith.index_cast %c24_i32 : i32 to index
    %370 = memref.load %arg3[%369] : memref<30xf32, #tpu.memory_space<smem>>
    %371 = vector.broadcast %370 : f32 to vector<8x128xf32>
    %372 = arith.addf %368, %371 : vector<8x128xf32>
    %cst_26 = arith.constant 0.000000e+00 : f32
    %373 = vector.broadcast %cst_26 : f32 to vector<8x128xf32>
    %374 = arith.maximumf %372, %373 : vector<8x128xf32>
    %375 = arith.index_cast %c24_i32 : i32 to index
    %376 = memref.load %arg4[%375] : memref<30xf32, #tpu.memory_space<smem>>
    %377 = vector.broadcast %376 : f32 to vector<8x128xf32>
    %378 = arith.mulf %374, %377 : vector<8x128xf32>
    %379 = arith.addf %364, %378 : vector<8x128xf32>
    %c25_i32 = arith.constant 25 : i32
    %380 = arith.index_cast %c25_i32 : i32 to index
    %381 = memref.load %arg2[%380] : memref<30xf32, #tpu.memory_space<smem>>
    %382 = vector.broadcast %381 : f32 to vector<8x128xf32>
    %383 = arith.mulf %0, %382 : vector<8x128xf32>
    %384 = arith.index_cast %c25_i32 : i32 to index
    %385 = memref.load %arg3[%384] : memref<30xf32, #tpu.memory_space<smem>>
    %386 = vector.broadcast %385 : f32 to vector<8x128xf32>
    %387 = arith.addf %383, %386 : vector<8x128xf32>
    %cst_27 = arith.constant 0.000000e+00 : f32
    %388 = vector.broadcast %cst_27 : f32 to vector<8x128xf32>
    %389 = arith.maximumf %387, %388 : vector<8x128xf32>
    %390 = arith.index_cast %c25_i32 : i32 to index
    %391 = memref.load %arg4[%390] : memref<30xf32, #tpu.memory_space<smem>>
    %392 = vector.broadcast %391 : f32 to vector<8x128xf32>
    %393 = arith.mulf %389, %392 : vector<8x128xf32>
    %394 = arith.addf %379, %393 : vector<8x128xf32>
    %c26_i32 = arith.constant 26 : i32
    %395 = arith.index_cast %c26_i32 : i32 to index
    %396 = memref.load %arg2[%395] : memref<30xf32, #tpu.memory_space<smem>>
    %397 = vector.broadcast %396 : f32 to vector<8x128xf32>
    %398 = arith.mulf %0, %397 : vector<8x128xf32>
    %399 = arith.index_cast %c26_i32 : i32 to index
    %400 = memref.load %arg3[%399] : memref<30xf32, #tpu.memory_space<smem>>
    %401 = vector.broadcast %400 : f32 to vector<8x128xf32>
    %402 = arith.addf %398, %401 : vector<8x128xf32>
    %cst_28 = arith.constant 0.000000e+00 : f32
    %403 = vector.broadcast %cst_28 : f32 to vector<8x128xf32>
    %404 = arith.maximumf %402, %403 : vector<8x128xf32>
    %405 = arith.index_cast %c26_i32 : i32 to index
    %406 = memref.load %arg4[%405] : memref<30xf32, #tpu.memory_space<smem>>
    %407 = vector.broadcast %406 : f32 to vector<8x128xf32>
    %408 = arith.mulf %404, %407 : vector<8x128xf32>
    %409 = arith.addf %394, %408 : vector<8x128xf32>
    %c27_i32 = arith.constant 27 : i32
    %410 = arith.index_cast %c27_i32 : i32 to index
    %411 = memref.load %arg2[%410] : memref<30xf32, #tpu.memory_space<smem>>
    %412 = vector.broadcast %411 : f32 to vector<8x128xf32>
    %413 = arith.mulf %0, %412 : vector<8x128xf32>
    %414 = arith.index_cast %c27_i32 : i32 to index
    %415 = memref.load %arg3[%414] : memref<30xf32, #tpu.memory_space<smem>>
    %416 = vector.broadcast %415 : f32 to vector<8x128xf32>
    %417 = arith.addf %413, %416 : vector<8x128xf32>
    %cst_29 = arith.constant 0.000000e+00 : f32
    %418 = vector.broadcast %cst_29 : f32 to vector<8x128xf32>
    %419 = arith.maximumf %417, %418 : vector<8x128xf32>
    %420 = arith.index_cast %c27_i32 : i32 to index
    %421 = memref.load %arg4[%420] : memref<30xf32, #tpu.memory_space<smem>>
    %422 = vector.broadcast %421 : f32 to vector<8x128xf32>
    %423 = arith.mulf %419, %422 : vector<8x128xf32>
    %424 = arith.addf %409, %423 : vector<8x128xf32>
    %c28_i32 = arith.constant 28 : i32
    %425 = arith.index_cast %c28_i32 : i32 to index
    %426 = memref.load %arg2[%425] : memref<30xf32, #tpu.memory_space<smem>>
    %427 = vector.broadcast %426 : f32 to vector<8x128xf32>
    %428 = arith.mulf %0, %427 : vector<8x128xf32>
    %429 = arith.index_cast %c28_i32 : i32 to index
    %430 = memref.load %arg3[%429] : memref<30xf32, #tpu.memory_space<smem>>
    %431 = vector.broadcast %430 : f32 to vector<8x128xf32>
    %432 = arith.addf %428, %431 : vector<8x128xf32>
    %cst_30 = arith.constant 0.000000e+00 : f32
    %433 = vector.broadcast %cst_30 : f32 to vector<8x128xf32>
    %434 = arith.maximumf %432, %433 : vector<8x128xf32>
    %435 = arith.index_cast %c28_i32 : i32 to index
    %436 = memref.load %arg4[%435] : memref<30xf32, #tpu.memory_space<smem>>
    %437 = vector.broadcast %436 : f32 to vector<8x128xf32>
    %438 = arith.mulf %434, %437 : vector<8x128xf32>
    %439 = arith.addf %424, %438 : vector<8x128xf32>
    %c29_i32 = arith.constant 29 : i32
    %440 = arith.index_cast %c29_i32 : i32 to index
    %441 = memref.load %arg2[%440] : memref<30xf32, #tpu.memory_space<smem>>
    %442 = vector.broadcast %441 : f32 to vector<8x128xf32>
    %443 = arith.mulf %0, %442 : vector<8x128xf32>
    %444 = arith.index_cast %c29_i32 : i32 to index
    %445 = memref.load %arg3[%444] : memref<30xf32, #tpu.memory_space<smem>>
    %446 = vector.broadcast %445 : f32 to vector<8x128xf32>
    %447 = arith.addf %443, %446 : vector<8x128xf32>
    %cst_31 = arith.constant 0.000000e+00 : f32
    %448 = vector.broadcast %cst_31 : f32 to vector<8x128xf32>
    %449 = arith.maximumf %447, %448 : vector<8x128xf32>
    %450 = arith.index_cast %c29_i32 : i32 to index
    %451 = memref.load %arg4[%450] : memref<30xf32, #tpu.memory_space<smem>>
    %452 = vector.broadcast %451 : f32 to vector<8x128xf32>
    %453 = arith.mulf %449, %452 : vector<8x128xf32>
    %454 = arith.addf %439, %453 : vector<8x128xf32>
    %c30_i32 = arith.constant 30 : i32
    %cst_32 = arith.constant 0.000000e+00 : f32
    %455 = vector.broadcast %cst_32 : f32 to vector<8x128xf32>
    %456 = arith.subf %455, %454 : vector<8x128xf32>
    %457 = math.exp %456 : vector<8x128xf32>
    %cst_33 = arith.constant 1.000000e+00 : f32
    %458 = vector.broadcast %cst_33 : f32 to vector<8x128xf32>
    %459 = arith.addf %458, %457 : vector<8x128xf32>
    %460 = tpu.reciprocal %459 {approx = true} : vector<8x128xf32> -> vector<8x128xf32>
    %c0_34 = arith.constant 0 : index
    %c0_35 = arith.constant 0 : index
    %461 = vector.load %arg6[%c0_34, %c0_35] : memref<8x128xf32, #tpu.memory_space<vmem>>, vector<8x128xf32>
    tpu.vector_store %arg6[%c0_34, %c0_35], %460 {strides = array<i32>} : memref<8x128xf32, #tpu.memory_space<vmem>>, vector<8x128xf32>,
    return
  }
  func.func @transform_0(%arg0: i32) -> (i32, i32) {
    %c0_i32 = arith.constant 0 : i32
    %c0_i32_0 = arith.constant 0 : i32
    return %arg0, %c0_i32 : i32, i32
  }
  func.func @transform_1(%arg0: i32) -> i32 {
    %c0_i32 = arith.constant 0 : i32
    %c0_i32_0 = arith.constant 0 : i32
    return %c0_i32 : i32
  }
  func.func @transform_2(%arg0: i32) -> i32 {
    %c0_i32 = arith.constant 0 : i32
    %c0_i32_0 = arith.constant 0 : i32
    return %c0_i32 : i32
  }
  func.func @transform_3(%arg0: i32) -> i32 {
    %c0_i32 = arith.constant 0 : i32
    %c0_i32_0 = arith.constant 0 : i32
    return %c0_i32 : i32
  }
  func.func @transform_4(%arg0: i32) -> i32 {
    %c0_i32 = arith.constant 0 : i32
    %c0_i32_0 = arith.constant 0 : i32
    return %c0_i32 : i32
  }
  func.func @transform_5(%arg0: i32) -> (i32, i32) {
    %c0_i32 = arith.constant 0 : i32
    %c0_i32_0 = arith.constant 0 : i32
    return %arg0, %c0_i32 : i32, i32
  }
}

</mosaic_0001>

<llo_original>
// kernel: tpu_custom_call.1
$region0: #{tpu_custom_call.1}
  #allocation0 [shape = 'u32[]', space=smem, size = 0x4, offset = 0x4, fixed_abs, tag = 'smem constant byte address 0x4 - core index']
  #allocation1 [shape = 'u32[144,128]{1,0:T(1,128)}', space=vmem, size = 0x12000, scoped, tag = 'internal scratch']
  #allocation2 [shape = 'f32[1]{0:T(128)S(6)}', space=smem, size = 0x200, scoped, tag = 'scoped memory for tpu_custom_call.1']
  %s0 = inlined_call_operand.hbm [shape: f32[8,128], index: 0, kind: input, shape index: {}]
  %s1 = inlined_call_operand.vmem [shape: f32[30], index: 1, kind: input, shape index: {}]
  %s2 = inlined_call_operand.vmem [shape: f32[30], index: 2, kind: input, shape index: {}]
  %s3 = inlined_call_operand.vmem [shape: f32[30], index: 3, kind: input, shape index: {}]
  %s4 = inlined_call_operand.<no memory space> [shape: f32[1], index: 4, kind: input, shape index: {}]
  %s5 = inlined_call_operand.hbm [shape: f32[8,128], index: 5, kind: output, shape index: {}]
  %s6 = sld [smem:[#allocation0]]
  $region46: #{tpu_custom_call.1} parent=0
    _
  %s8 = ssub.s32 1, %s6
  %s9 = scalar_select 0, %s8, %s6
  %10 = sst [smem:[#allocation2]] %s4
  $region1: #{tpu_custom_call.1} parent=0
    #allocation3 [shape = 'u8[4096]{0}', space=vmem, size = 0x1000, scoped, tag = 'input window, operand 0, single buffered']
    #allocation4 [shape = 's32[1]{0}', space=sflag, size = 0x4, scoped, tag = 'scoped memory for tpu_custom_call.1']
    #allocation5 [shape = 's32[1]{0}', space=sflag, size = 0x4, scoped, tag = 'scoped memory for tpu_custom_call.1']
    #allocation6 [shape = 's32[1]{0}', space=sflag, size = 0x4, scoped, tag = 'scoped memory for tpu_custom_call.1']
    #allocation7 [shape = 'u8[512]{0}', space=smem, size = 0x200, scoped, tag = 'input window, operand 1, single buffered']
    #allocation8 [shape = 'u8[512]{0}', space=smem, size = 0x200, scoped, tag = 'input window, operand 2, single buffered']
    #allocation9 [shape = 's32[1]{0}', space=sflag, size = 0x4, scoped, tag = 'scoped memory for tpu_custom_call.1']
    #allocation10 [shape = 'u8[512]{0}', space=smem, size = 0x200, scoped, tag = 'input window, operand 3, single buffered']
    #allocation11 [shape = 'u8[4096]{0}', space=vmem, size = 0x1000, scoped, tag = 'output window, operand 0, single buffered']
    %11 = vsyncpa [#allocation4], 0
    %12 = vsyncpa [#allocation6], 0
    %13 = vsyncpa [#allocation9], 0
    %14 = vsyncpa [#allocation5], 0
    // Predicated region
    $region2: #{tpu_custom_call.1} parent=1 // pred_check
      _
    $region3: #{tpu_custom_call.1} parent=1 // pred_check_branch
      %16 = sbr.rel (0) target = $region5
    $region4: #{tpu_custom_call.1} parent=1 // pred_region
      %s18 = ssub.s32 128, 128
      %19 = vsyncadd [#allocation4], %s18
      %s21 = sshll.u32 [#allocation3], 4
      %s22 = int_to_ptr.vmem [resolvable:$true] %s21
      %24 = dma.hbm_to_vmem [thread:$0]  %s0, 128, %s22, [#allocation4]
    $region5: #{tpu_custom_call.1} parent=1 // pred_fallthru
      _
    // Predicated region
    $region6: #{tpu_custom_call.1} parent=1 // pred_check
      _
    $region7: #{tpu_custom_call.1} parent=1 // pred_check_branch
      %26 = sbr.rel (0) target = $region9
    $region8: #{tpu_custom_call.1} parent=1 // pred_region
      %s28 = ssub.s32 16, 16
      %29 = vsyncadd [#allocation6], %s28
      %s31 = sshll.u32 %s1, 4
      %s32 = int_to_ptr.vmem [resolvable:$true] %s31
      %34 = dma.vmem_to_smem %s32, 16, [#allocation7], [#allocation6]
    $region9: #{tpu_custom_call.1} parent=1 // pred_fallthru
      _
    // Predicated region
    $region10: #{tpu_custom_call.1} parent=1 // pred_check
      _
    $region11: #{tpu_custom_call.1} parent=1 // pred_check_branch
      %36 = sbr.rel (0) target = $region13
    $region12: #{tpu_custom_call.1} parent=1 // pred_region
      %s38 = ssub.s32 16, 16
      %39 = vsyncadd [#allocation9], %s38
      %s41 = sshll.u32 %s2, 4
      %s42 = int_to_ptr.vmem [resolvable:$true] %s41
      %44 = dma.vmem_to_smem %s42, 16, [#allocation8], [#allocation9]
    $region13: #{tpu_custom_call.1} parent=1 // pred_fallthru
      _
    // Predicated region
    $region14: #{tpu_custom_call.1} parent=1 // pred_check
      _
    $region15: #{tpu_custom_call.1} parent=1 // pred_check_branch
      %46 = sbr.rel (0) target = $region17
    $region16: #{tpu_custom_call.1} parent=1 // pred_region
      %s48 = ssub.s32 16, 16
      %49 = vsyncadd [#allocation9], %s48
      %s51 = sshll.u32 %s3, 4
      %s52 = int_to_ptr.vmem [resolvable:$true] %s51
      %54 = dma.vmem_to_smem %s52, 16, [#allocation10], [#allocation9]
    $region17: #{tpu_custom_call.1} parent=1 // pred_fallthru
      _
    // Predicated region
    $region18: #{tpu_custom_call.1} parent=1 // pred_check
      _
    $region19: #{tpu_custom_call.1} parent=1 // pred_check_branch
      %56 = sbr.rel (0) target = $region21
    $region20: #{tpu_custom_call.1} parent=1 // pred_region
      _
    $region21: #{tpu_custom_call.1} parent=1 // pred_fallthru
      _
    // Predicated region
    $region22: #{tpu_custom_call.1} parent=1 // pred_check
      _
    $region23: #{tpu_custom_call.1} parent=1 // pred_check_branch
      %58 = sbr.rel (0) target = $region25
    $region24: #{tpu_custom_call.1} parent=1 // pred_region
      %59 = dma.done [#allocation4], 128
    $region25: #{tpu_custom_call.1} parent=1 // pred_fallthru
      _
    // Predicated region
    $region26: #{tpu_custom_call.1} parent=1 // pred_check
      _
    $region27: #{tpu_custom_call.1} parent=1 // pred_check_branch
      %61 = sbr.rel (0) target = $region29
    $region28: #{tpu_custom_call.1} parent=1 // pred_region
      %62 = dma.done [#allocation6], 16
    $region29: #{tpu_custom_call.1} parent=1 // pred_fallthru
      _
    // Predicated region
    $region30: #{tpu_custom_call.1} parent=1 // pred_check
      _
    $region31: #{tpu_custom_call.1} parent=1 // pred_check_branch
      %64 = sbr.rel (0) target = $region33
    $region32: #{tpu_custom_call.1} parent=1 // pred_region
      %65 = dma.done [#allocation9], 16
    $region33: #{tpu_custom_call.1} parent=1 // pred_fallthru
      _
    // Predicated region
    $region34: #{tpu_custom_call.1} parent=1 // pred_check
      _
    $region35: #{tpu_custom_call.1} parent=1 // pred_check_branch
      %67 = sbr.rel (0) target = $region37
    $region36: #{tpu_custom_call.1} parent=1 // pred_region
      %68 = dma.done [#allocation9], 16
    $region37: #{tpu_custom_call.1} parent=1 // pred_fallthru
      _
    %69 = sfence
    %v70 = vld [vmem:[#allocation3] sm:$0xff]
    %s71 = sld [smem:[#allocation2]]
    %v72 = vstv %s71
    %v73 = vadd.f32 %v72, 0.0
    %s74 = sld [smem:[#allocation7]]
    %v75 = vstv %s74
    %v76 = vmul.f32 %v70, %v75
    %s77 = sld [smem:[#allocation8]]
    %v78 = vstv %s77
    %v79 = vadd.f32 %v76, %v78
    %v80 = vmax.f32 %v79, 0.0
    %s81 = sld [smem:[#allocation10]]
    %v82 = vstv %s81
    %v83 = vmul.f32 %v80, %v82
    %v84 = vadd.f32 %v73, %v83
    %s85 = sld [smem:[#allocation7 + $0x1]]
    %v86 = vstv %s85
    %v87 = vmul.f32 %v70, %v86
    %s88 = sld [smem:[#allocation8 + $0x1]]
    %v89 = vstv %s88
    %v90 = vadd.f32 %v87, %v89
    %v91 = vmax.f32 %v90, 0.0
    %s92 = sld [smem:[#allocation10 + $0x1]]
    %v93 = vstv %s92
    %v94 = vmul.f32 %v91, %v93
    %v95 = vadd.f32 %v84, %v94
    %s96 = sld [smem:[#allocation7 + $0x2]]
    %v97 = vstv %s96
    %v98 = vmul.f32 %v70, %v97
    %s99 = sld [smem:[#allocation8 + $0x2]]
    %v100 = vstv %s99
    %v101 = vadd.f32 %v98, %v100
    %v102 = vmax.f32 %v101, 0.0
    %s103 = sld [smem:[#allocation10 + $0x2]]
    %v104 = vstv %s103
    %v105 = vmul.f32 %v102, %v104
    %v106 = vadd.f32 %v95, %v105
    %s107 = sld [smem:[#allocation7 + $0x3]]
    %v108 = vstv %s107
    %v109 = vmul.f32 %v70, %v108
    %s110 = sld [smem:[#allocation8 + $0x3]]
    %v111 = vstv %s110
    %v112 = vadd.f32 %v109, %v111
    %v113 = vmax.f32 %v112, 0.0
    %s114 = sld [smem:[#allocation10 + $0x3]]
    %v115 = vstv %s114
    %v116 = vmul.f32 %v113, %v115
    %v117 = vadd.f32 %v106, %v116
    %s118 = sld [smem:[#allocation7 + $0x4]]
    %v119 = vstv %s118
    %v120 = vmul.f32 %v70, %v119
    %s121 = sld [smem:[#allocation8 + $0x4]]
    %v122 = vstv %s121
    %v123 = vadd.f32 %v120, %v122
    %v124 = vmax.f32 %v123, 0.0
    %s125 = sld [smem:[#allocation10 + $0x4]]
    %v126 = vstv %s125
    %v127 = vmul.f32 %v124, %v126
    %v128 = vadd.f32 %v117, %v127
    %s129 = sld [smem:[#allocation7 + $0x5]]
    %v130 = vstv %s129
    %v131 = vmul.f32 %v70, %v130
    %s132 = sld [smem:[#allocation8 + $0x5]]
    %v133 = vstv %s132
    %v134 = vadd.f32 %v131, %v133
    %v135 = vmax.f32 %v134, 0.0
    %s136 = sld [smem:[#allocation10 + $0x5]]
    %v137 = vstv %s136
    %v138 = vmul.f32 %v135, %v137
    %v139 = vadd.f32 %v128, %v138
    %s140 = sld [smem:[#allocation7 + $0x6]]
    %v141 = vstv %s140
    %v142 = vmul.f32 %v70, %v141
    %s143 = sld [smem:[#allocation8 + $0x6]]
    %v144 = vstv %s143
    %v145 = vadd.f32 %v142, %v144
    %v146 = vmax.f32 %v145, 0.0
    %s147 = sld [smem:[#allocation10 + $0x6]]
    %v148 = vstv %s147
    %v149 = vmul.f32 %v146, %v148
    %v150 = vadd.f32 %v139, %v149
    %s151 = sld [smem:[#allocation7 + $0x7]]
    %v152 = vstv %s151
    %v153 = vmul.f32 %v70, %v152
    %s154 = sld [smem:[#allocation8 + $0x7]]
    %v155 = vstv %s154
    %v156 = vadd.f32 %v153, %v155
    %v157 = vmax.f32 %v156, 0.0
    %s158 = sld [smem:[#allocation10 + $0x7]]
    %v159 = vstv %s158
    %v160 = vmul.f32 %v157, %v159
    %v161 = vadd.f32 %v150, %v160
    %s162 = sld [smem:[#allocation7 + $0x8]]
    %v163 = vstv %s162
    %v164 = vmul.f32 %v70, %v163
    %s165 = sld [smem:[#allocation8 + $0x8]]
    %v166 = vstv %s165
    %v167 = vadd.f32 %v164, %v166
    %v168 = vmax.f32 %v167, 0.0
    %s169 = sld [smem:[#allocation10 + $0x8]]
    %v170 = vstv %s169
    %v171 = vmul.f32 %v168, %v170
    %v172 = vadd.f32 %v161, %v171
    %s173 = sld [smem:[#allocation7 + $0x9]]
    %v174 = vstv %s173
    %v175 = vmul.f32 %v70, %v174
    %s176 = sld [smem:[#allocation8 + $0x9]]
    %v177 = vstv %s176
    %v178 = vadd.f32 %v175, %v177
    %v179 = vmax.f32 %v178, 0.0
    %s180 = sld [smem:[#allocation10 + $0x9]]
    %v181 = vstv %s180
    %v182 = vmul.f32 %v179, %v181
    %v183 = vadd.f32 %v172, %v182
    %s184 = sld [smem:[#allocation7 + $0xa]]
    %v185 = vstv %s184
    %v186 = vmul.f32 %v70, %v185
    %s187 = sld [smem:[#allocation8 + $0xa]]
    %v188 = vstv %s187
    %v189 = vadd.f32 %v186, %v188
    %v190 = vmax.f32 %v189, 0.0
    %s191 = sld [smem:[#allocation10 + $0xa]]
    %v192 = vstv %s191
    %v193 = vmul.f32 %v190, %v192
    %v194 = vadd.f32 %v183, %v193
    %s195 = sld [smem:[#allocation7 + $0xb]]
    %v196 = vstv %s195
    %v197 = vmul.f32 %v70, %v196
    %s198 = sld [smem:[#allocation8 + $0xb]]
    %v199 = vstv %s198
    %v200 = vadd.f32 %v197, %v199
    %v201 = vmax.f32 %v200, 0.0
    %s202 = sld [smem:[#allocation10 + $0xb]]
    %v203 = vstv %s202
    %v204 = vmul.f32 %v201, %v203
    %v205 = vadd.f32 %v194, %v204
    %s206 = sld [smem:[#allocation7 + $0xc]]
    %v207 = vstv %s206
    %v208 = vmul.f32 %v70, %v207
    %s209 = sld [smem:[#allocation8 + $0xc]]
    %v210 = vstv %s209
    %v211 = vadd.f32 %v208, %v210
    %v212 = vmax.f32 %v211, 0.0
    %s213 = sld [smem:[#allocation10 + $0xc]]
    %v214 = vstv %s213
    %v215 = vmul.f32 %v212, %v214
    %v216 = vadd.f32 %v205, %v215
    %s217 = sld [smem:[#allocation7 + $0xd]]
    %v218 = vstv %s217
    %v219 = vmul.f32 %v70, %v218
    %s220 = sld [smem:[#allocation8 + $0xd]]
    %v221 = vstv %s220
    %v222 = vadd.f32 %v219, %v221
    %v223 = vmax.f32 %v222, 0.0
    %s224 = sld [smem:[#allocation10 + $0xd]]
    %v225 = vstv %s224
    %v226 = vmul.f32 %v223, %v225
    %v227 = vadd.f32 %v216, %v226
    %s228 = sld [smem:[#allocation7 + $0xe]]
    %v229 = vstv %s228
    %v230 = vmul.f32 %v70, %v229
    %s231 = sld [smem:[#allocation8 + $0xe]]
    %v232 = vstv %s231
    %v233 = vadd.f32 %v230, %v232
    %v234 = vmax.f32 %v233, 0.0
    %s235 = sld [smem:[#allocation10 + $0xe]]
    %v236 = vstv %s235
    %v237 = vmul.f32 %v234, %v236
    %v238 = vadd.f32 %v227, %v237
    %s239 = sld [smem:[#allocation7 + $0xf]]
    %v240 = vstv %s239
    %v241 = vmul.f32 %v70, %v240
    %s242 = sld [smem:[#allocation8 + $0xf]]
    %v243 = vstv %s242
    %v244 = vadd.f32 %v241, %v243
    %v245 = vmax.f32 %v244, 0.0
    %s246 = sld [smem:[#allocation10 + $0xf]]
    %v247 = vstv %s246
    %v248 = vmul.f32 %v245, %v247
    %v249 = vadd.f32 %v238, %v248
    %s250 = sld [smem:[#allocation7 + $0x10]]
    %v251 = vstv %s250
    %v252 = vmul.f32 %v70, %v251
    %s253 = sld [smem:[#allocation8 + $0x10]]
    %v254 = vstv %s253
    %v255 = vadd.f32 %v252, %v254
    %v256 = vmax.f32 %v255, 0.0
    %s257 = sld [smem:[#allocation10 + $0x10]]
    %v258 = vstv %s257
    %v259 = vmul.f32 %v256, %v258
    %v260 = vadd.f32 %v249, %v259
    %s261 = sld [smem:[#allocation7 + $0x11]]
    %v262 = vstv %s261
    %v263 = vmul.f32 %v70, %v262
    %s264 = sld [smem:[#allocation8 + $0x11]]
    %v265 = vstv %s264
    %v266 = vadd.f32 %v263, %v265
    %v267 = vmax.f32 %v266, 0.0
    %s268 = sld [smem:[#allocation10 + $0x11]]
    %v269 = vstv %s268
    %v270 = vmul.f32 %v267, %v269
    %v271 = vadd.f32 %v260, %v270
    %s272 = sld [smem:[#allocation7 + $0x12]]
    %v273 = vstv %s272
    %v274 = vmul.f32 %v70, %v273
    %s275 = sld [smem:[#allocation8 + $0x12]]
    %v276 = vstv %s275
    %v277 = vadd.f32 %v274, %v276
    %v278 = vmax.f32 %v277, 0.0
    %s279 = sld [smem:[#allocation10 + $0x12]]
    %v280 = vstv %s279
    %v281 = vmul.f32 %v278, %v280
    %v282 = vadd.f32 %v271, %v281
    %s283 = sld [smem:[#allocation7 + $0x13]]
    %v284 = vstv %s283
    %v285 = vmul.f32 %v70, %v284
    %s286 = sld [smem:[#allocation8 + $0x13]]
    %v287 = vstv %s286
    %v288 = vadd.f32 %v285, %v287
    %v289 = vmax.f32 %v288, 0.0
    %s290 = sld [smem:[#allocation10 + $0x13]]
    %v291 = vstv %s290
    %v292 = vmul.f32 %v289, %v291
    %v293 = vadd.f32 %v282, %v292
    %s294 = sld [smem:[#allocation7 + $0x14]]
    %v295 = vstv %s294
    %v296 = vmul.f32 %v70, %v295
    %s297 = sld [smem:[#allocation8 + $0x14]]
    %v298 = vstv %s297
    %v299 = vadd.f32 %v296, %v298
    %v300 = vmax.f32 %v299, 0.0
    %s301 = sld [smem:[#allocation10 + $0x14]]
    %v302 = vstv %s301
    %v303 = vmul.f32 %v300, %v302
    %v304 = vadd.f32 %v293, %v303
    %s305 = sld [smem:[#allocation7 + $0x15]]
    %v306 = vstv %s305
    %v307 = vmul.f32 %v70, %v306
    %s308 = sld [smem:[#allocation8 + $0x15]]
    %v309 = vstv %s308
    %v310 = vadd.f32 %v307, %v309
    %v311 = vmax.f32 %v310, 0.0
    %s312 = sld [smem:[#allocation10 + $0x15]]
    %v313 = vstv %s312
    %v314 = vmul.f32 %v311, %v313
    %v315 = vadd.f32 %v304, %v314
    %s316 = sld [smem:[#allocation7 + $0x16]]
    %v317 = vstv %s316
    %v318 = vmul.f32 %v70, %v317
    %s319 = sld [smem:[#allocation8 + $0x16]]
    %v320 = vstv %s319
    %v321 = vadd.f32 %v318, %v320
    %v322 = vmax.f32 %v321, 0.0
    %s323 = sld [smem:[#allocation10 + $0x16]]
    %v324 = vstv %s323
    %v325 = vmul.f32 %v322, %v324
    %v326 = vadd.f32 %v315, %v325
    %s327 = sld [smem:[#allocation7 + $0x17]]
    %v328 = vstv %s327
    %v329 = vmul.f32 %v70, %v328
    %s330 = sld [smem:[#allocation8 + $0x17]]
    %v331 = vstv %s330
    %v332 = vadd.f32 %v329, %v331
    %v333 = vmax.f32 %v332, 0.0
    %s334 = sld [smem:[#allocation10 + $0x17]]
    %v335 = vstv %s334
    %v336 = vmul.f32 %v333, %v335
    %v337 = vadd.f32 %v326, %v336
    %s338 = sld [smem:[#allocation7 + $0x18]]
    %v339 = vstv %s338
    %v340 = vmul.f32 %v70, %v339
    %s341 = sld [smem:[#allocation8 + $0x18]]
    %v342 = vstv %s341
    %v343 = vadd.f32 %v340, %v342
    %v344 = vmax.f32 %v343, 0.0
    %s345 = sld [smem:[#allocation10 + $0x18]]
    %v346 = vstv %s345
    %v347 = vmul.f32 %v344, %v346
    %v348 = vadd.f32 %v337, %v347
    %s349 = sld [smem:[#allocation7 + $0x19]]
    %v350 = vstv %s349
    %v351 = vmul.f32 %v70, %v350
    %s352 = sld [smem:[#allocation8 + $0x19]]
    %v353 = vstv %s352
    %v354 = vadd.f32 %v351, %v353
    %v355 = vmax.f32 %v354, 0.0
    %s356 = sld [smem:[#allocation10 + $0x19]]
    %v357 = vstv %s356
    %v358 = vmul.f32 %v355, %v357
    %v359 = vadd.f32 %v348, %v358
    %s360 = sld [smem:[#allocation7 + $0x1a]]
    %v361 = vstv %s360
    %v362 = vmul.f32 %v70, %v361
    %s363 = sld [smem:[#allocation8 + $0x1a]]
    %v364 = vstv %s363
    %v365 = vadd.f32 %v362, %v364
    %v366 = vmax.f32 %v365, 0.0
    %s367 = sld [smem:[#allocation10 + $0x1a]]
    %v368 = vstv %s367
    %v369 = vmul.f32 %v366, %v368
    %v370 = vadd.f32 %v359, %v369
    %s371 = sld [smem:[#allocation7 + $0x1b]]
    %v372 = vstv %s371
    %v373 = vmul.f32 %v70, %v372
    %s374 = sld [smem:[#allocation8 + $0x1b]]
    %v375 = vstv %s374
    %v376 = vadd.f32 %v373, %v375
    %v377 = vmax.f32 %v376, 0.0
    %s378 = sld [smem:[#allocation10 + $0x1b]]
    %v379 = vstv %s378
    %v380 = vmul.f32 %v377, %v379
    %v381 = vadd.f32 %v370, %v380
    %s382 = sld [smem:[#allocation7 + $0x1c]]
    %v383 = vstv %s382
    %v384 = vmul.f32 %v70, %v383
    %s385 = sld [smem:[#allocation8 + $0x1c]]
    %v386 = vstv %s385
    %v387 = vadd.f32 %v384, %v386
    %v388 = vmax.f32 %v387, 0.0
    %s389 = sld [smem:[#allocation10 + $0x1c]]
    %v390 = vstv %s389
    %v391 = vmul.f32 %v388, %v390
    %v392 = vadd.f32 %v381, %v391
    %s393 = sld [smem:[#allocation7 + $0x1d]]
    %v394 = vstv %s393
    %v395 = vmul.f32 %v70, %v394
    %s396 = sld [smem:[#allocation8 + $0x1d]]
    %v397 = vstv %s396
    %v398 = vadd.f32 %v395, %v397
    %v399 = vmax.f32 %v398, 0.0
    %s400 = sld [smem:[#allocation10 + $0x1d]]
    %v401 = vstv %s400
    %v402 = vmul.f32 %v399, %v401
    %v403 = vadd.f32 %v392, %v402
    %v404 = vsub.f32 0.0, %v403
    %v405 = vmul.f32 %v404, 1.442695
    %v406 = vpow.pop %v405
    %v407 = vadd.f32 %v406, 1.0
    %v408 = vrcp.pop %v407
    %409 = vst [vmem:[#allocation11] sm:$0xff] %v408
    // Predicated region
    $region38: #{tpu_custom_call.1} parent=1 // pred_check
      _
    $region39: #{tpu_custom_call.1} parent=1 // pred_check_branch
      %411 = sbr.rel (0) target = $region41
    $region40: #{tpu_custom_call.1} parent=1 // pred_region
      %s413 = ssub.s32 128, 128
      %414 = vsyncadd [#allocation5], %s413
      %s416 = sshll.u32 [#allocation11], 4
      %s417 = int_to_ptr.vmem [resolvable:$true] %s416
      %419 = dma.vmem_to_hbm [thread:$0]  %s417, 128, %s5, [#allocation5]
    $region41: #{tpu_custom_call.1} parent=1 // pred_fallthru
      _
    // Predicated region
    $region42: #{tpu_custom_call.1} parent=1 // pred_check
      _
    $region43: #{tpu_custom_call.1} parent=1 // pred_check_branch
      %421 = sbr.rel (0) target = $region45
    $region44: #{tpu_custom_call.1} parent=1 // pred_region
      %422 = dma.done [#allocation5], 128
    $region45: #{tpu_custom_call.1} parent=1 // pred_fallthru
      _
    %423 = vsyncpa [#allocation4], 1
    %424 = vsyncpa [#allocation5], 1
    %425 = vsyncpa [#allocation6], 1
    %426 = vsyncpa [#allocation9], 1

</llo_original>
